<compile_context>
chip_gen: v7x
topology: tpu7x:2x2x1
jax: 0.10.0
libtpu: 0.0.40
codegen_flags: <defaults>
</compile_context>

<pallas_src>
import functools
import math

import jax
import jax.numpy as jnp
from jax.experimental import pallas as pl
from jax.experimental.pallas import tpu as pltpu


def _round_up(x, m):
    return ((x + m - 1) // m) * m


# ---------------------------------------------------------------------------
# Stage 1: ax = x @ A^T   (tiny rank dot, done once per M tile, not per N tile)
# ---------------------------------------------------------------------------
def _lora_a_kernel(x_ref, a_ref, ax_ref):
    # x_ref: (TM, TK), a_ref: (TK, R), ax_ref: (TM, R) f32 output, resident
    # across the K reduction axis (same output block index for all k).
    k = pl.program_id(1)

    @pl.when(k == 0)
    def _():
        ax_ref[...] = jnp.zeros_like(ax_ref)

    ax_ref[...] += jnp.dot(x_ref[...], a_ref[...],
                           preferred_element_type=jnp.float32)


# ---------------------------------------------------------------------------
# Stage 2: Y = x @ Wq^T + ax @ B^T + bias
# ---------------------------------------------------------------------------
def _lqlora_kernel_f32out(x_ref, wq_ref, ax_ref, b_ref, bias_ref, o_ref):
    # f32 output: accumulate directly into the resident output block
    # (no scratch accumulator, no epilogue copy).
    k = pl.program_id(2)

    @pl.when(k == 0)
    def _():
        # Seed with bias + LoRA-B contribution (ax is constant across k).
        o_ref[...] = bias_ref[...] + jnp.dot(
            ax_ref[...].astype(b_ref.dtype), b_ref[...],
            preferred_element_type=jnp.float32)

    o_ref[...] += jnp.dot(x_ref[...], wq_ref[...],
                          preferred_element_type=jnp.float32)


def _lqlora_kernel(x_ref, wq_ref, ax_ref, b_ref, bias_ref, o_ref, acc_ref):
    # Non-f32 output (e.g. bf16): keep an f32 scratch accumulator.
    k = pl.program_id(2)

    @pl.when(k == 0)
    def _():
        acc_ref[...] = bias_ref[...] + jnp.dot(
            ax_ref[...].astype(b_ref.dtype), b_ref[...],
            preferred_element_type=jnp.float32)

    acc_ref[...] += jnp.dot(x_ref[...], wq_ref[...],
                            preferred_element_type=jnp.float32)

    @pl.when(k == pl.num_programs(2) - 1)
    def _():
        o_ref[...] = acc_ref[...].astype(o_ref.dtype)


# ---------------------------------------------------------------------------
# Jitted forward: only x is padded per call; weights arrive pre-padded.
# ---------------------------------------------------------------------------
@functools.partial(jax.jit, static_argnames=("out_feature", "tm", "tn", "tk"))
def _linear_quant_lora_forward(x, wq_t, a_t, b_t, bias_p, *,
                               out_feature, tm, tn, tk):
    *lead, in_feature = x.shape
    m = math.prod(lead) if lead else 1

    k_pad, n_pad = wq_t.shape
    r_pad = a_t.shape[1]
    compute_dtype = wq_t.dtype
    out_dtype = x.dtype

    itemsize = jnp.dtype(compute_dtype).itemsize
    sub = max(8, 32 // itemsize)          # 8 for f32, 16 for bf16, 32 for int8
    tm_eff = min(tm, _round_up(m, sub))
    m_pad = _round_up(m, tm_eff)
    tn_eff = min(tn, n_pad)               # n_pad is a multiple of tn_eff
    tk_eff = min(tk, k_pad)               # k_pad is a multiple of tk_eff

    x2d = jnp.pad(x.reshape(m, in_feature).astype(compute_dtype),
                  ((0, m_pad - m), (0, k_pad - in_feature)))

    # ---- Stage 1: LoRA-A activations (hoisted out of the main kernel) ----
    ax = pl.pallas_call(
        _lora_a_kernel,
        out_shape=jax.ShapeDtypeStruct((m_pad, r_pad), jnp.float32),
        grid_spec=pltpu.PrefetchScalarGridSpec(
            num_scalar_prefetch=0,
            grid=(m_pad // tm_eff, k_pad // tk_eff),
            in_specs=[
                pl.BlockSpec((tm_eff, tk_eff), lambda i, k: (i, k)),
                pl.BlockSpec((tk_eff, r_pad), lambda i, k: (k, 0)),
            ],
            out_specs=pl.BlockSpec((tm_eff, r_pad), lambda i, k: (i, 0)),
        ),
        compiler_params=pltpu.CompilerParams(
            dimension_semantics=("parallel", "arbitrary")),
    )(x2d, a_t)

    # ---- Stage 2: main matmul + LoRA-B + bias ----
    direct = (jnp.dtype(out_dtype) == jnp.dtype(jnp.float32))
    kernel = _lqlora_kernel_f32out if direct else _lqlora_kernel
    scratch = [] if direct else [pltpu.VMEM((tm_eff, tn_eff), jnp.float32)]

    grid = (m_pad // tm_eff, n_pad // tn_eff, k_pad // tk_eff)

    flops = 2 * m_pad * k_pad * n_pad + 2 * m_pad * r_pad * n_pad
    bytes_accessed = int(
        x2d.size * x2d.dtype.itemsize * grid[1]        # x streamed per N tile
        + wq_t.size * wq_t.dtype.itemsize * grid[0]    # Wq streamed per M tile
        + ax.size * 4
        + b_t.size * b_t.dtype.itemsize
        + bias_p.size * 4
        + m_pad * n_pad * jnp.dtype(out_dtype).itemsize)

    out2d = pl.pallas_call(
        kernel,
        out_shape=jax.ShapeDtypeStruct((m_pad, n_pad), out_dtype),
        grid_spec=pltpu.PrefetchScalarGridSpec(
            num_scalar_prefetch=0,
            grid=grid,
            in_specs=[
                pl.BlockSpec((tm_eff, tk_eff), lambda i, j, k: (i, k)),
                pl.BlockSpec((tk_eff, tn_eff), lambda i, j, k: (k, j)),
                pl.BlockSpec((tm_eff, r_pad), lambda i, j, k: (i, 0)),
                pl.BlockSpec((r_pad, tn_eff), lambda i, j, k: (0, j)),
                pl.BlockSpec((1, tn_eff), lambda i, j, k: (0, j)),
            ],
            out_specs=pl.BlockSpec((tm_eff, tn_eff), lambda i, j, k: (i, j)),
            scratch_shapes=scratch,
        ),
        compiler_params=pltpu.CompilerParams(
            dimension_semantics=("parallel", "parallel", "arbitrary")),
        cost_estimate=pl.CostEstimate(
            flops=flops, transcendentals=0, bytes_accessed=bytes_accessed),
    )(x2d, wq_t, ax, b_t, bias_p)

    return out2d[:m, :out_feature].reshape(*lead, out_feature)


# ---------------------------------------------------------------------------
# Module-style wrapper: pad/transpose/cast the weights exactly once.
# ---------------------------------------------------------------------------
class LinearQuantLoRAKernel:
    """Pallas TPU port of LinearQuantLoRA (LoRA/QLoRA/OQFV adapter path)."""

    def __init__(self, quant_weight, lora_a_weight, lora_b_weight, bias=None,
                 *, compute_dtype=None, tm=512, tn=512, tk=512):
        quant_weight = jnp.asarray(quant_weight)
        lora_a_weight = jnp.asarray(lora_a_weight)
        lora_b_weight = jnp.asarray(lora_b_weight)

        out_feature, in_feature = quant_weight.shape
        rank = lora_a_weight.shape[0]
        assert lora_a_weight.shape == (rank, in_feature)
        assert lora_b_weight.shape == (out_feature, rank)

        self.in_feature = in_feature
        self.out_feature = out_feature
        self.tm, self.tn, self.tk = tm, tn, tk

        dtype = compute_dtype if compute_dtype is not None else quant_weight.dtype
        tn_eff = min(tn, _round_up(out_feature, 128))
        tk_eff = min(tk, _round_up(in_feature, 128))
        r_pad = _round_up(rank, 128)
        n_pad = _round_up(out_feature, tn_eff)
        k_pad = _round_up(in_feature, tk_eff)

        # One-time transpose + pad + cast to (K,N)/(K,R)/(R,N) layouts so every
        # in-kernel dot is a plain (M,K)@(K,N) MXU matmul.  Done once here and
        # cached; the per-call forward only pads the activations.
        self.wq_t = jnp.pad(quant_weight.T.astype(dtype),
                            ((0, k_pad - in_feature), (0, n_pad - out_feature)))
        self.a_t = jnp.pad(lora_a_weight.T.astype(dtype),
                           ((0, k_pad - in_feature), (0, r_pad - rank)))
        self.b_t = jnp.pad(lora_b_weight.T.astype(dtype),
                           ((0, r_pad - rank), (0, n_pad - out_feature)))
        if bias is None:
            bias = jnp.zeros((out_feature,), jnp.float32)
        self.bias_p = jnp.pad(
            jnp.asarray(bias, jnp.float32).reshape(1, out_feature),
            ((0, 0), (0, n_pad - out_feature)))
        self.compute_dtype = dtype

    def __call__(self, x):
        return _linear_quant_lora_forward(
            x, self.wq_t, self.a_t, self.b_t, self.bias_p,
            out_feature=self.out_feature, tm=self.tm, tn=self.tn, tk=self.tk)


if __name__ == "__main__":
    # Small shapes consistent with the module's forward.
    batch, seq = 2, 8
    in_feature, out_feature, reduced_rank = 64, 32, 8

    key = jax.random.PRNGKey(0)
    kx, kq, ka, kb, kbias = jax.random.split(key, 5)

    # Deterministic synthetic parameters in PyTorch layout.  PyTorch init would
    # zero lora_B/bias; use random values so the LoRA path is exercised.
    x = jax.random.normal(kx, (batch, seq, in_feature), jnp.float32)
    wq = jax.random.normal(kq, (out_feature, in_feature), jnp.float32) * 0.05
    lora_a = jax.random.normal(ka, (reduced_rank, in_feature), jnp.float32) * 0.05
    lora_b = jax.random.normal(kb, (out_feature, reduced_rank), jnp.float32) * 0.05
    bias = jax.random.normal(kbias, (out_feature,), jnp.float32) * 0.01

    # Pure-JAX reference of the PyTorch forward.
    hx = jnp.einsum("bsi,oi->bso", x, wq)
    abx = jnp.einsum("bsr,or->bso",
                     jnp.einsum("bsi,ri->bsr", x, lora_a), lora_b)
    y_ref = hx + abx + bias

    # f32 path (matches PyTorch numerics; direct-to-output accumulation).
    layer_f32 = LinearQuantLoRAKernel(wq, lora_a, lora_b, bias)
    y = jax.block_until_ready(layer_f32(x))
    assert y.shape == (batch, seq, out_feature)
    assert jnp.allclose(y, y_ref, atol=1e-4, rtol=1e-4)

    # bf16 compute path (recommended on v6e/v7x: bf16 MXU feeds, f32 accum).
    layer_bf16 = LinearQuantLoRAKernel(wq, lora_a, lora_b, bias,
                                       compute_dtype=jnp.bfloat16)
    y_bf16 = jax.block_until_ready(layer_bf16(x.astype(jnp.bfloat16)))
    assert y_bf16.dtype == jnp.bfloat16
    assert jnp.allclose(y_bf16.astype(jnp.float32), y_ref, atol=5e-2, rtol=5e-2)

    print("KERNEL_OK")
</pallas_src>

<mosaic_0001>
module attributes {stable_mosaic.version = 11 : i64} {
  func.func @_lora_a_kernel(%arg0: i32, %arg1: i32, %arg2: memref<16x128xf32, #tpu.memory_space<vmem>>, %arg3: memref<128x128xf32, #tpu.memory_space<vmem>>, %arg4: memref<16x128xf32, #tpu.memory_space<vmem>>) attributes {dimension_semantics = [#tpu.dimension_semantics<parallel>, #tpu.dimension_semantics<arbitrary>], iteration_bounds = array<i64: 1, 1>, scalar_prefetch = 0 : i64, scratch_operands = 0 : i64, tpu.core_type = #tpu.core_type<tc>, window_params = [{transform_indices = @transform_0, window_bounds = array<i64: 16, 128>}, {transform_indices = @transform_1, window_bounds = array<i64: 128, 128>}, {transform_indices = @transform_2, window_bounds = array<i64: 16, 128>}]} {
    %c0_i32 = arith.constant 0 : i32
    %0 = arith.cmpi eq, %arg1, %c0_i32 : i32
    %1 = arith.extui %0 : i1 to i32
    %c0_i32_0 = arith.constant 0 : i32
    %2 = arith.cmpi ne, %1, %c0_i32_0 : i32
    scf.if %2 {
      %cst_8 = arith.constant 0.000000e+00 : f32
      %9 = vector.broadcast %cst_8 : f32 to vector<16x128xf32>
      %c0_9 = arith.constant 0 : index
      %c0_10 = arith.constant 0 : index
      %10 = vector.load %arg4[%c0_9, %c0_10] : memref<16x128xf32, #tpu.memory_space<vmem>>, vector<16x128xf32>
      tpu.vector_store %arg4[%c0_9, %c0_10], %9 {strides = array<i32>} : memref<16x128xf32, #tpu.memory_space<vmem>>, vector<16x128xf32>,
    } else {
    }
    %c0 = arith.constant 0 : index
    %c0_1 = arith.constant 0 : index
    %3 = vector.load %arg4[%c0, %c0_1] : memref<16x128xf32, #tpu.memory_space<vmem>>, vector<16x128xf32>
    %c0_2 = arith.constant 0 : index
    %c0_3 = arith.constant 0 : index
    %4 = vector.load %arg2[%c0_2, %c0_3] : memref<16x128xf32, #tpu.memory_space<vmem>>, vector<16x128xf32>
    %c0_4 = arith.constant 0 : index
    %c0_5 = arith.constant 0 : index
    %5 = vector.load %arg3[%c0_4, %c0_5] : memref<128x128xf32, #tpu.memory_space<vmem>>, vector<128x128xf32>
    %cst = arith.constant dense<0.000000e+00> : vector<16x128xf32>
    %6 = tpu.matmul %4, %5, %cst {dimension_numbers = #tpu.dot_dimension_numbers<[1], [0], [0], [1], [0, 0, 1, 1], [], []>} : vector<16x128xf32>, vector<128x128xf32>, vector<16x128xf32> -> vector<16x128xf32>
    %7 = arith.addf %3, %6 : vector<16x128xf32>
    %c0_6 = arith.constant 0 : index
    %c0_7 = arith.constant 0 : index
    %8 = vector.load %arg4[%c0_6, %c0_7] : memref<16x128xf32, #tpu.memory_space<vmem>>, vector<16x128xf32>
    tpu.vector_store %arg4[%c0_6, %c0_7], %7 {strides = array<i32>} : memref<16x128xf32, #tpu.memory_space<vmem>>, vector<16x128xf32>,
    return
  }
  func.func @transform_0(%arg0: i32, %arg1: i32) -> (i32, i32) {
    %c0_i32 = arith.constant 0 : i32
    return %arg0, %arg1 : i32, i32
  }
  func.func @transform_1(%arg0: i32, %arg1: i32) -> (i32, i32) {
    %c0_i32 = arith.constant 0 : i32
    %c0_i32_0 = arith.constant 0 : i32
    return %arg1, %c0_i32 : i32, i32
  }
  func.func @transform_2(%arg0: i32, %arg1: i32) -> (i32, i32) {
    %c0_i32 = arith.constant 0 : i32
    %c0_i32_0 = arith.constant 0 : i32
    return %arg0, %c0_i32 : i32, i32
  }
}

module attributes {stable_mosaic.version = 11 : i64} {
  func.func @_lqlora_kernel_f32out(%arg0: i32, %arg1: i32, %arg2: i32, %arg3: memref<16x128xf32, #tpu.memory_space<vmem>>, %arg4: memref<128x128xf32, #tpu.memory_space<vmem>>, %arg5: memref<16x128xf32, #tpu.memory_space<vmem>>, %arg6: memref<128x128xf32, #tpu.memory_space<vmem>>, %arg7: memref<1x128xf32, #tpu.memory_space<vmem>>, %arg8: memref<16x128xf32, #tpu.memory_space<vmem>>) attributes {dimension_semantics = [#tpu.dimension_semantics<parallel>, #tpu.dimension_semantics<parallel>, #tpu.dimension_semantics<arbitrary>], iteration_bounds = array<i64: 1, 1, 1>, scalar_prefetch = 0 : i64, scratch_operands = 0 : i64, tpu.core_type = #tpu.core_type<tc>, window_params = [{transform_indices = @transform_0, window_bounds = array<i64: 16, 128>}, {transform_indices = @transform_1, window_bounds = array<i64: 128, 128>}, {transform_indices = @transform_2, window_bounds = array<i64: 16, 128>}, {transform_indices = @transform_3, window_bounds = array<i64: 128, 128>}, {transform_indices = @transform_4, window_bounds = array<i64: 1, 128>}, {transform_indices = @transform_5, window_bounds = array<i64: 16, 128>}]} {
    %c0_i32 = arith.constant 0 : i32
    %0 = arith.cmpi eq, %arg2, %c0_i32 : i32
    %1 = arith.extui %0 : i1 to i32
    %c0_i32_0 = arith.constant 0 : i32
    %2 = arith.cmpi ne, %1, %c0_i32_0 : i32
    scf.if %2 {
      %c0_8 = arith.constant 0 : index
      %c0_9 = arith.constant 0 : index
      %9 = vector.load %arg7[%c0_8, %c0_9] : memref<1x128xf32, #tpu.memory_space<vmem>>, vector<1x128xf32>
      %c0_10 = arith.constant 0 : index
      %c0_11 = arith.constant 0 : index
      %10 = vector.load %arg5[%c0_10, %c0_11] : memref<16x128xf32, #tpu.memory_space<vmem>>, vector<16x128xf32>
      %c0_12 = arith.constant 0 : index
      %c0_13 = arith.constant 0 : index
      %11 = vector.load %arg6[%c0_12, %c0_13] : memref<128x128xf32, #tpu.memory_space<vmem>>, vector<128x128xf32>
      %cst_14 = arith.constant dense<0.000000e+00> : vector<16x128xf32>
      %12 = tpu.matmul %10, %11, %cst_14 {dimension_numbers = #tpu.dot_dimension_numbers<[1], [0], [0], [1], [0, 0, 1, 1], [], []>} : vector<16x128xf32>, vector<128x128xf32>, vector<16x128xf32> -> vector<16x128xf32>
      %13 = vector.broadcast %9 : vector<1x128xf32> to vector<16x128xf32>
      %14 = arith.addf %13, %12 : vector<16x128xf32>
      %c0_15 = arith.constant 0 : index
      %c0_16 = arith.constant 0 : index
      %15 = vector.load %arg8[%c0_15, %c0_16] : memref<16x128xf32, #tpu.memory_space<vmem>>, vector<16x128xf32>
      tpu.vector_store %arg8[%c0_15, %c0_16], %14 {strides = array<i32>} : memref<16x128xf32, #tpu.memory_space<vmem>>, vector<16x128xf32>,
    } else {
    }
    %c0 = arith.constant 0 : index
    %c0_1 = arith.constant 0 : index
    %3 = vector.load %arg8[%c0, %c0_1] : memref<16x128xf32, #tpu.memory_space<vmem>>, vector<16x128xf32>
    %c0_2 = arith.constant 0 : index
    %c0_3 = arith.constant 0 : index
    %4 = vector.load %arg3[%c0_2, %c0_3] : memref<16x128xf32, #tpu.memory_space<vmem>>, vector<16x128xf32>
    %c0_4 = arith.constant 0 : index
    %c0_5 = arith.constant 0 : index
    %5 = vector.load %arg4[%c0_4, %c0_5] : memref<128x128xf32, #tpu.memory_space<vmem>>, vector<128x128xf32>
    %cst = arith.constant dense<0.000000e+00> : vector<16x128xf32>
    %6 = tpu.matmul %4, %5, %cst {dimension_numbers = #tpu.dot_dimension_numbers<[1], [0], [0], [1], [0, 0, 1, 1], [], []>} : vector<16x128xf32>, vector<128x128xf32>, vector<16x128xf32> -> vector<16x128xf32>
    %7 = arith.addf %3, %6 : vector<16x128xf32>
    %c0_6 = arith.constant 0 : index
    %c0_7 = arith.constant 0 : index
    %8 = vector.load %arg8[%c0_6, %c0_7] : memref<16x128xf32, #tpu.memory_space<vmem>>, vector<16x128xf32>
    tpu.vector_store %arg8[%c0_6, %c0_7], %7 {strides = array<i32>} : memref<16x128xf32, #tpu.memory_space<vmem>>, vector<16x128xf32>,
    return
  }
  func.func @transform_0(%arg0: i32, %arg1: i32, %arg2: i32) -> (i32, i32) {
    %c0_i32 = arith.constant 0 : i32
    return %arg0, %arg2 : i32, i32
  }
  func.func @transform_1(%arg0: i32, %arg1: i32, %arg2: i32) -> (i32, i32) {
    %c0_i32 = arith.constant 0 : i32
    return %arg2, %arg1 : i32, i32
  }
  func.func @transform_2(%arg0: i32, %arg1: i32, %arg2: i32) -> (i32, i32) {
    %c0_i32 = arith.constant 0 : i32
    %c0_i32_0 = arith.constant 0 : i32
    return %arg0, %c0_i32 : i32, i32
  }
  func.func @transform_3(%arg0: i32, %arg1: i32, %arg2: i32) -> (i32, i32) {
    %c0_i32 = arith.constant 0 : i32
    %c0_i32_0 = arith.constant 0 : i32
    return %c0_i32, %arg1 : i32, i32
  }
  func.func @transform_4(%arg0: i32, %arg1: i32, %arg2: i32) -> (i32, i32) {
    %c0_i32 = arith.constant 0 : i32
    %c0_i32_0 = arith.constant 0 : i32
    return %c0_i32, %arg1 : i32, i32
  }
  func.func @transform_5(%arg0: i32, %arg1: i32, %arg2: i32) -> (i32, i32) {
    %c0_i32 = arith.constant 0 : i32
    return %arg0, %arg1 : i32, i32
  }
}

</mosaic_0001>

<llo_original>
// kernel: _linear_quant_lora_forward.3
$region0: #{_linear_quant_lora_forward.3}
  #allocation0 [shape = 'u32[]', space=smem, size = 0x4, offset = 0x4, fixed_abs, tag = 'smem constant byte address 0x4 - core index']
  #allocation1 [shape = 'u32[144,128]{1,0:T(1,128)}', space=vmem, size = 0x12000, scoped, tag = 'internal scratch']
  %s0 = inlined_call_operand.vmem [shape: f32[16,128], index: 0, kind: input, shape index: {}]
  %s1 = inlined_call_operand.vmem [shape: f32[128,128], index: 1, kind: input, shape index: {}]
  %s2 = inlined_call_operand.vmem [shape: f32[16,128], index: 2, kind: input, shape index: {}]
  %s3 = inlined_call_operand.hbm [shape: f32[128,128], index: 3, kind: input, shape index: {}]
  %s4 = inlined_call_operand.vmem [shape: f32[1,128], index: 4, kind: input, shape index: {}]
  %s5 = inlined_call_operand.vmem [shape: f32[16,128], index: 5, kind: output, shape index: {}]
  %s6 = sld [smem:[#allocation0]]
  $region38: #{_linear_quant_lora_forward.3} parent=0
    _
  %s8 = ssub.s32 1, %s6
  %s9 = scalar_select 0, %s8, %s6
  $region1: #{_linear_quant_lora_forward.3} parent=0
    #allocation2 [shape = 'u8[65536]{0}', space=vmem, size = 0x10000, scoped, tag = 'input window, operand 3, single buffered']
    #allocation3 [shape = 's32[1]{0}', space=sflag, size = 0x4, scoped, tag = 'scoped memory for _linear_quant_lora_forward.3']
    %10 = vsyncpa [#allocation3], 0
    // Predicated region
    $region2: #{_linear_quant_lora_forward.3} parent=1 // pred_check
      _
    $region3: #{_linear_quant_lora_forward.3} parent=1 // pred_check_branch
      %12 = sbr.rel (0) target = $region5
    $region4: #{_linear_quant_lora_forward.3} parent=1 // pred_region
      _
    $region5: #{_linear_quant_lora_forward.3} parent=1 // pred_fallthru
      _
    // Predicated region
    $region6: #{_linear_quant_lora_forward.3} parent=1 // pred_check
      _
    $region7: #{_linear_quant_lora_forward.3} parent=1 // pred_check_branch
      %14 = sbr.rel (0) target = $region9
    $region8: #{_linear_quant_lora_forward.3} parent=1 // pred_region
      _
    $region9: #{_linear_quant_lora_forward.3} parent=1 // pred_fallthru
      _
    // Predicated region
    $region10: #{_linear_quant_lora_forward.3} parent=1 // pred_check
      _
    $region11: #{_linear_quant_lora_forward.3} parent=1 // pred_check_branch
      %16 = sbr.rel (0) target = $region13
    $region12: #{_linear_quant_lora_forward.3} parent=1 // pred_region
      _
    $region13: #{_linear_quant_lora_forward.3} parent=1 // pred_fallthru
      _
    // Predicated region
    $region14: #{_linear_quant_lora_forward.3} parent=1 // pred_check
      _
    $region15: #{_linear_quant_lora_forward.3} parent=1 // pred_check_branch
      %18 = sbr.rel (0) target = $region17
    $region16: #{_linear_quant_lora_forward.3} parent=1 // pred_region
      %s20 = ssub.s32 2048, 2048
      %21 = vsyncadd [#allocation3], %s20
      %s22 = sshll.u32 [#allocation2], 4
      %s23 = int_to_ptr.vmem [resolvable:$true] %s22
      %28 = dma.hbm_to_vmem [thread:$0]  %s3, 2048, %s23, [#allocation3], 128, 128, 8
    $region17: #{_linear_quant_lora_forward.3} parent=1 // pred_fallthru
      _
    // Predicated region
    $region18: #{_linear_quant_lora_forward.3} parent=1 // pred_check
      _
    $region19: #{_linear_quant_lora_forward.3} parent=1 // pred_check_branch
      %30 = sbr.rel (0) target = $region21
    $region20: #{_linear_quant_lora_forward.3} parent=1 // pred_region
      _
    $region21: #{_linear_quant_lora_forward.3} parent=1 // pred_fallthru
      _
    // Predicated region
    $region22: #{_linear_quant_lora_forward.3} parent=1 // pred_check
      _
    $region23: #{_linear_quant_lora_forward.3} parent=1 // pred_check_branch
      %32 = sbr.rel (0) target = $region25
    $region24: #{_linear_quant_lora_forward.3} parent=1 // pred_region
      %33 = dma.done [#allocation3], 2048
    $region25: #{_linear_quant_lora_forward.3} parent=1 // pred_fallthru
      _
    %p34 = scmp.eq.s32.totalorder 0, 0
    // Predicated region
    $region26: #{_linear_quant_lora_forward.3} parent=1 // pred_check
      %p35 = pneg %p34
    $region27: #{_linear_quant_lora_forward.3} parent=1 // pred_check_branch
      %37 = sbr.rel (%p35) target = $region29
    $region28: #{_linear_quant_lora_forward.3} parent=1 // pred_region
      %v38 = vld [vmem:[%s4] sm:$0x1]
      %v39 = vld [vmem:[%s2] sm:$0xff]
      %v40 = vld [vmem:[%s2 + $0x8] sm:$0xff]
      %v41 = vld [vmem:[#allocation2] sm:$0xff]
      %v42 = vld [vmem:[#allocation2 + $0x8] sm:$0xff]
      %v43 = vld [vmem:[#allocation2 + $0x10] sm:$0xff]
      %v44 = vld [vmem:[#allocation2 + $0x18] sm:$0xff]
      %v45 = vld [vmem:[#allocation2 + $0x20] sm:$0xff]
      %v46 = vld [vmem:[#allocation2 + $0x28] sm:$0xff]
      %v47 = vld [vmem:[#allocation2 + $0x30] sm:$0xff]
      %v48 = vld [vmem:[#allocation2 + $0x38] sm:$0xff]
      %v49 = vld [vmem:[#allocation2 + $0x40] sm:$0xff]
      %v50 = vld [vmem:[#allocation2 + $0x48] sm:$0xff]
      %v51 = vld [vmem:[#allocation2 + $0x50] sm:$0xff]
      %v52 = vld [vmem:[#allocation2 + $0x58] sm:$0xff]
      %v53 = vld [vmem:[#allocation2 + $0x60] sm:$0xff]
      %v54 = vld [vmem:[#allocation2 + $0x68] sm:$0xff]
      %v55 = vld [vmem:[#allocation2 + $0x70] sm:$0xff]
      %v56 = vld [vmem:[#allocation2 + $0x78] sm:$0xff]
      %57 = vmatprep.subr.mxu0 0.0
      %58 = vmatpush1.msra.mxu0 %v41
      %59 = vmatprep.subr.mxu0 0.0
      %60 = vmatpush1.msra.mxu0 %v42
      %61 = vmatprep.subr.mxu0 0.0
      %62 = vmatpush1.msra.mxu0 %v43
      %63 = vmatprep.subr.mxu0 0.0
      %64 = vmatpush1.msra.mxu0 %v44
      %65 = vmatprep.subr.mxu0 0.0
      %66 = vmatpush1.msra.mxu0 %v45
      %67 = vmatprep.subr.mxu0 0.0
      %68 = vmatpush1.msra.mxu0 %v46
      %69 = vmatprep.subr.mxu0 0.0
      %70 = vmatpush1.msra.mxu0 %v47
      %71 = vmatprep.subr.mxu0 0.0
      %72 = vmatpush1.msra.mxu0 %v48
      %73 = vmatprep.subr.mxu0 0.0
      %74 = vmatpush1.msra.mxu0 %v49
      %75 = vmatprep.subr.mxu0 0.0
      %76 = vmatpush1.msra.mxu0 %v50
      %77 = vmatprep.subr.mxu0 0.0
      %78 = vmatpush1.msra.mxu0 %v51
      %79 = vmatprep.subr.mxu0 0.0
      %80 = vmatpush1.msra.mxu0 %v52
      %81 = vmatprep.subr.mxu0 0.0
      %82 = vmatpush1.msra.mxu0 %v53
      %83 = vmatprep.subr.mxu0 0.0
      %84 = vmatpush1.msra.mxu0 %v54
      %85 = vmatprep.subr.mxu0 0.0
      %86 = vmatpush1.msra.mxu0 %v55
      %87 = vmatprep.subr.mxu0 0.0
      %88 = vmatpush1.msra.mxu0 %v56
      %89 = vmatprep.subr.mxu0 0.0
      %90 = vmatpush1.msra.mxu0 0.0
      %91 = vmatprep.subr.mxu0 0.0
      %92 = vmatpush1.msra.mxu0 0.0
      %93 = vmatprep.subr.mxu0 0.0
      %94 = vmatpush1.msra.mxu0 0.0
      %95 = vmatprep.subr.mxu0 0.0
      %96 = vmatpush1.msra.mxu0 0.0
      %97 = vmatprep.subr.mxu0 0.0
      %98 = vmatpush1.msra.mxu0 0.0
      %99 = vmatprep.subr.mxu0 0.0
      %100 = vmatpush1.msra.mxu0 0.0
      %101 = vmatprep.subr.mxu0 0.0
      %102 = vmatpush1.msra.mxu0 0.0
      %103 = vmatprep.subr.mxu0 0.0
      %104 = vmatpush1.msra.mxu0 0.0
      %105 = vmatprep.subr.mxu0 0.0
      %106 = vmatpush1.msra.mxu0 0.0
      %107 = vmatprep.subr.mxu0 0.0
      %108 = vmatpush1.msra.mxu0 0.0
      %109 = vmatprep.subr.mxu0 0.0
      %110 = vmatpush1.msra.mxu0 0.0
      %111 = vmatprep.subr.mxu0 0.0
      %112 = vmatpush1.msra.mxu0 0.0
      %113 = vmatprep.subr.mxu0 0.0
      %114 = vmatpush1.msra.mxu0 0.0
      %115 = vmatprep.subr.mxu0 0.0
      %116 = vmatpush1.msra.mxu0 0.0
      %117 = vmatprep.subr.mxu0 0.0
      %118 = vmatpush1.msra.mxu0 0.0
      %119 = vmatprep.subr.mxu0 0.0
      %120 = vmatpush1.msra.mxu0 0.0
      %121 = vmatprep.mubr.f32.mxu0 0.0
      %122 = vmatmul.mubr.f32.gmra.mrb[0].mxu0 %v39
      %v123 = vpop.f32.mrb[0].mxu0
      %v124 = vadd.f32 0.0, %v123
      %v125 = vpop.f32.mrb[0].mxu0
      %126 = vmatprep.mubr.f32.mxu0 0.0
      %127 = vmatmul.mubr.f32.gmra.mrb[0].mxu0 %v40
      %v128 = vpop.f32.mrb[0].mxu0
      %v129 = vadd.f32 0.0, %v128
      %v130 = vpop.f32.mrb[0].mxu0
      %131 = vdwg.mxu0
      %v133 = vlaneseq
      %v134 = vshrl.u32 %v133, 7
      %v135 = vsub.s32 0, %v134
      %v136 = vrot.slane %v38, %v135
      %v138 = vadd.f32 %v136, %v124
      %v139 = vadd.f32 %v136, %v129
      %140 = vst [vmem:[%s5] sm:$0xff] %v138
      %141 = vst [vmem:[%s5 + $0x8] sm:$0xff] %v139
    $region29: #{_linear_quant_lora_forward.3} parent=1 // pred_fallthru
      _
    %v142 = vld [vmem:[%s5] sm:$0xff]
    %v143 = vld [vmem:[%s5 + $0x8] sm:$0xff]
    %v144 = vld [vmem:[%s0] sm:$0xff]
    %v145 = vld [vmem:[%s0 + $0x8] sm:$0xff]
    %v146 = vld [vmem:[%s1] sm:$0xff]
    %v147 = vld [vmem:[%s1 + $0x8] sm:$0xff]
    %v148 = vld [vmem:[%s1 + $0x10] sm:$0xff]
    %v149 = vld [vmem:[%s1 + $0x18] sm:$0xff]
    %v150 = vld [vmem:[%s1 + $0x20] sm:$0xff]
    %v151 = vld [vmem:[%s1 + $0x28] sm:$0xff]
    %v152 = vld [vmem:[%s1 + $0x30] sm:$0xff]
    %v153 = vld [vmem:[%s1 + $0x38] sm:$0xff]
    %v154 = vld [vmem:[%s1 + $0x40] sm:$0xff]
    %v155 = vld [vmem:[%s1 + $0x48] sm:$0xff]
    %v156 = vld [vmem:[%s1 + $0x50] sm:$0xff]
    %v157 = vld [vmem:[%s1 + $0x58] sm:$0xff]
    %v158 = vld [vmem:[%s1 + $0x60] sm:$0xff]
    %v159 = vld [vmem:[%s1 + $0x68] sm:$0xff]
    %v160 = vld [vmem:[%s1 + $0x70] sm:$0xff]
    %v161 = vld [vmem:[%s1 + $0x78] sm:$0xff]
    %162 = vmatprep.subr.mxu0 0.0
    %163 = vmatpush1.msra.mxu0 %v146
    %164 = vmatprep.subr.mxu0 0.0
    %165 = vmatpush1.msra.mxu0 %v147
    %166 = vmatprep.subr.mxu0 0.0
    %167 = vmatpush1.msra.mxu0 %v148
    %168 = vmatprep.subr.mxu0 0.0
    %169 = vmatpush1.msra.mxu0 %v149
    %170 = vmatprep.subr.mxu0 0.0
    %171 = vmatpush1.msra.mxu0 %v150
    %172 = vmatprep.subr.mxu0 0.0
    %173 = vmatpush1.msra.mxu0 %v151
    %174 = vmatprep.subr.mxu0 0.0
    %175 = vmatpush1.msra.mxu0 %v152
    %176 = vmatprep.subr.mxu0 0.0
    %177 = vmatpush1.msra.mxu0 %v153
    %178 = vmatprep.subr.mxu0 0.0
    %179 = vmatpush1.msra.mxu0 %v154
    %180 = vmatprep.subr.mxu0 0.0
    %181 = vmatpush1.msra.mxu0 %v155
    %182 = vmatprep.subr.mxu0 0.0
    %183 = vmatpush1.msra.mxu0 %v156
    %184 = vmatprep.subr.mxu0 0.0
    %185 = vmatpush1.msra.mxu0 %v157
    %186 = vmatprep.subr.mxu0 0.0
    %187 = vmatpush1.msra.mxu0 %v158
    %188 = vmatprep.subr.mxu0 0.0
    %189 = vmatpush1.msra.mxu0 %v159
    %190 = vmatprep.subr.mxu0 0.0
    %191 = vmatpush1.msra.mxu0 %v160
    %192 = vmatprep.subr.mxu0 0.0
    %193 = vmatpush1.msra.mxu0 %v161
    %194 = vmatprep.subr.mxu0 0.0
    %195 = vmatpush1.msra.mxu0 0.0
    %196 = vmatprep.subr.mxu0 0.0
    %197 = vmatpush1.msra.mxu0 0.0
    %198 = vmatprep.subr.mxu0 0.0
    %199 = vmatpush1.msra.mxu0 0.0
    %200 = vmatprep.subr.mxu0 0.0
    %201 = vmatpush1.msra.mxu0 0.0
    %202 = vmatprep.subr.mxu0 0.0
    %203 = vmatpush1.msra.mxu0 0.0
    %204 = vmatprep.subr.mxu0 0.0
    %205 = vmatpush1.msra.mxu0 0.0
    %206 = vmatprep.subr.mxu0 0.0
    %207 = vmatpush1.msra.mxu0 0.0
    %208 = vmatprep.subr.mxu0 0.0
    %209 = vmatpush1.msra.mxu0 0.0
    %210 = vmatprep.subr.mxu0 0.0
    %211 = vmatpush1.msra.mxu0 0.0
    %212 = vmatprep.subr.mxu0 0.0
    %213 = vmatpush1.msra.mxu0 0.0
    %214 = vmatprep.subr.mxu0 0.0
    %215 = vmatpush1.msra.mxu0 0.0
    %216 = vmatprep.subr.mxu0 0.0
    %217 = vmatpush1.msra.mxu0 0.0
    %218 = vmatprep.subr.mxu0 0.0
    %219 = vmatpush1.msra.mxu0 0.0
    %220 = vmatprep.subr.mxu0 0.0
    %221 = vmatpush1.msra.mxu0 0.0
    %222 = vmatprep.subr.mxu0 0.0
    %223 = vmatpush1.msra.mxu0 0.0
    %224 = vmatprep.subr.mxu0 0.0
    %225 = vmatpush1.msra.mxu0 0.0
    %226 = vmatprep.mubr.f32.mxu0 0.0
    %227 = vmatmul.mubr.f32.gmra.mrb[0].mxu0 %v144
    %v228 = vpop.f32.mrb[0].mxu0
    %v229 = vadd.f32 0.0, %v228
    %v230 = vpop.f32.mrb[0].mxu0
    %231 = vmatprep.mubr.f32.mxu0 0.0
    %232 = vmatmul.mubr.f32.gmra.mrb[0].mxu0 %v145
    %v233 = vpop.f32.mrb[0].mxu0
    %v234 = vadd.f32 0.0, %v233
    %v235 = vpop.f32.mrb[0].mxu0
    %236 = vdwg.mxu0
    %v237 = vadd.f32 %v142, %v229
    %v238 = vadd.f32 %v143, %v234
    %239 = vst [vmem:[%s5] sm:$0xff] %v237
    %240 = vst [vmem:[%s5 + $0x8] sm:$0xff] %v238
    // Predicated region
    $region30: #{_linear_quant_lora_forward.3} parent=1 // pred_check
      _
    $region31: #{_linear_quant_lora_forward.3} parent=1 // pred_check_branch
      %242 = sbr.rel (0) target = $region33
    $region32: #{_linear_quant_lora_forward.3} parent=1 // pred_region
      _
    $region33: #{_linear_quant_lora_forward.3} parent=1 // pred_fallthru
      _
    // Predicated region
    $region34: #{_linear_quant_lora_forward.3} parent=1 // pred_check
      _
    $region35: #{_linear_quant_lora_forward.3} parent=1 // pred_check_branch
      %244 = sbr.rel (0) target = $region37
    $region36: #{_linear_quant_lora_forward.3} parent=1 // pred_region
      _
    $region37: #{_linear_quant_lora_forward.3} parent=1 // pred_fallthru
      _
    %245 = vsyncpa [#allocation3], 1

// kernel: _linear_quant_lora_forward.2
$region0: #{_linear_quant_lora_forward.2}
  #allocation0 [shape = 'u32[]', space=smem, size = 0x4, offset = 0x4, fixed_abs, tag = 'smem constant byte address 0x4 - core index']
  #allocation1 [shape = 'u32[144,128]{1,0:T(1,128)}', space=vmem, size = 0x12000, scoped, tag = 'internal scratch']
  %s0 = inlined_call_operand.vmem [shape: f32[16,128], index: 0, kind: input, shape index: {}]
  %s1 = inlined_call_operand.hbm [shape: f32[128,128], index: 1, kind: input, shape index: {}]
  %s2 = inlined_call_operand.vmem [shape: f32[16,128], index: 2, kind: output, shape index: {}]
  %s3 = sld [smem:[#allocation0]]
  $region26: #{_linear_quant_lora_forward.2} parent=0
    _
  %s5 = ssub.s32 1, %s3
  %s6 = scalar_select 0, %s5, %s3
  $region1: #{_linear_quant_lora_forward.2} parent=0
    #allocation2 [shape = 'u8[65536]{0}', space=vmem, size = 0x10000, scoped, tag = 'input window, operand 1, single buffered']
    #allocation3 [shape = 's32[1]{0}', space=sflag, size = 0x4, scoped, tag = 'scoped memory for _linear_quant_lora_forward.2']
    %7 = vsyncpa [#allocation3], 0
    // Predicated region
    $region2: #{_linear_quant_lora_forward.2} parent=1 // pred_check
      _
    $region3: #{_linear_quant_lora_forward.2} parent=1 // pred_check_branch
      %9 = sbr.rel (0) target = $region5
    $region4: #{_linear_quant_lora_forward.2} parent=1 // pred_region
      _
    $region5: #{_linear_quant_lora_forward.2} parent=1 // pred_fallthru
      _
    // Predicated region
    $region6: #{_linear_quant_lora_forward.2} parent=1 // pred_check
      _
    $region7: #{_linear_quant_lora_forward.2} parent=1 // pred_check_branch
      %11 = sbr.rel (0) target = $region9
    $region8: #{_linear_quant_lora_forward.2} parent=1 // pred_region
      %s13 = ssub.s32 2048, 2048
      %14 = vsyncadd [#allocation3], %s13
      %s15 = sshll.u32 [#allocation2], 4
      %s16 = int_to_ptr.vmem [resolvable:$true] %s15
      %21 = dma.hbm_to_vmem [thread:$0]  %s1, 2048, %s16, [#allocation3], 128, 128, 8
    $region9: #{_linear_quant_lora_forward.2} parent=1 // pred_fallthru
      _
    // Predicated region
    $region10: #{_linear_quant_lora_forward.2} parent=1 // pred_check
      _
    $region11: #{_linear_quant_lora_forward.2} parent=1 // pred_check_branch
      %23 = sbr.rel (0) target = $region13
    $region12: #{_linear_quant_lora_forward.2} parent=1 // pred_region
      %24 = dma.done [#allocation3], 2048
    $region13: #{_linear_quant_lora_forward.2} parent=1 // pred_fallthru
      _
    %p25 = scmp.eq.s32.totalorder 0, 0
    // Predicated region
    $region14: #{_linear_quant_lora_forward.2} parent=1 // pred_check
      %p26 = pneg %p25
    $region15: #{_linear_quant_lora_forward.2} parent=1 // pred_check_branch
      %28 = sbr.rel (%p26) target = $region17
    $region16: #{_linear_quant_lora_forward.2} parent=1 // pred_region
      %29 = vst [vmem:[%s2] sm:$0xff] 0.0
      %30 = vst [vmem:[%s2 + $0x8] sm:$0xff] 0.0
    $region17: #{_linear_quant_lora_forward.2} parent=1 // pred_fallthru
      _
    %v31 = vld [vmem:[%s2] sm:$0xff]
    %v32 = vld [vmem:[%s2 + $0x8] sm:$0xff]
    %v33 = vld [vmem:[%s0] sm:$0xff]
    %v34 = vld [vmem:[%s0 + $0x8] sm:$0xff]
    %v35 = vld [vmem:[#allocation2] sm:$0xff]
    %v36 = vld [vmem:[#allocation2 + $0x8] sm:$0xff]
    %v37 = vld [vmem:[#allocation2 + $0x10] sm:$0xff]
    %v38 = vld [vmem:[#allocation2 + $0x18] sm:$0xff]
    %v39 = vld [vmem:[#allocation2 + $0x20] sm:$0xff]
    %v40 = vld [vmem:[#allocation2 + $0x28] sm:$0xff]
    %v41 = vld [vmem:[#allocation2 + $0x30] sm:$0xff]
    %v42 = vld [vmem:[#allocation2 + $0x38] sm:$0xff]
    %v43 = vld [vmem:[#allocation2 + $0x40] sm:$0xff]
    %v44 = vld [vmem:[#allocation2 + $0x48] sm:$0xff]
    %v45 = vld [vmem:[#allocation2 + $0x50] sm:$0xff]
    %v46 = vld [vmem:[#allocation2 + $0x58] sm:$0xff]
    %v47 = vld [vmem:[#allocation2 + $0x60] sm:$0xff]
    %v48 = vld [vmem:[#allocation2 + $0x68] sm:$0xff]
    %v49 = vld [vmem:[#allocation2 + $0x70] sm:$0xff]
    %v50 = vld [vmem:[#allocation2 + $0x78] sm:$0xff]
    %51 = vmatprep.subr.mxu0 0.0
    %52 = vmatpush1.msra.mxu0 %v35
    %53 = vmatprep.subr.mxu0 0.0
    %54 = vmatpush1.msra.mxu0 %v36
    %55 = vmatprep.subr.mxu0 0.0
    %56 = vmatpush1.msra.mxu0 %v37
    %57 = vmatprep.subr.mxu0 0.0
    %58 = vmatpush1.msra.mxu0 %v38
    %59 = vmatprep.subr.mxu0 0.0
    %60 = vmatpush1.msra.mxu0 %v39
    %61 = vmatprep.subr.mxu0 0.0
    %62 = vmatpush1.msra.mxu0 %v40
    %63 = vmatprep.subr.mxu0 0.0
    %64 = vmatpush1.msra.mxu0 %v41
    %65 = vmatprep.subr.mxu0 0.0
    %66 = vmatpush1.msra.mxu0 %v42
    %67 = vmatprep.subr.mxu0 0.0
    %68 = vmatpush1.msra.mxu0 %v43
    %69 = vmatprep.subr.mxu0 0.0
    %70 = vmatpush1.msra.mxu0 %v44
    %71 = vmatprep.subr.mxu0 0.0
    %72 = vmatpush1.msra.mxu0 %v45
    %73 = vmatprep.subr.mxu0 0.0
    %74 = vmatpush1.msra.mxu0 %v46
    %75 = vmatprep.subr.mxu0 0.0
    %76 = vmatpush1.msra.mxu0 %v47
    %77 = vmatprep.subr.mxu0 0.0
    %78 = vmatpush1.msra.mxu0 %v48
    %79 = vmatprep.subr.mxu0 0.0
    %80 = vmatpush1.msra.mxu0 %v49
    %81 = vmatprep.subr.mxu0 0.0
    %82 = vmatpush1.msra.mxu0 %v50
    %83 = vmatprep.subr.mxu0 0.0
    %84 = vmatpush1.msra.mxu0 0.0
    %85 = vmatprep.subr.mxu0 0.0
    %86 = vmatpush1.msra.mxu0 0.0
    %87 = vmatprep.subr.mxu0 0.0
    %88 = vmatpush1.msra.mxu0 0.0
    %89 = vmatprep.subr.mxu0 0.0
    %90 = vmatpush1.msra.mxu0 0.0
    %91 = vmatprep.subr.mxu0 0.0
    %92 = vmatpush1.msra.mxu0 0.0
    %93 = vmatprep.subr.mxu0 0.0
    %94 = vmatpush1.msra.mxu0 0.0
    %95 = vmatprep.subr.mxu0 0.0
    %96 = vmatpush1.msra.mxu0 0.0
    %97 = vmatprep.subr.mxu0 0.0
    %98 = vmatpush1.msra.mxu0 0.0
    %99 = vmatprep.subr.mxu0 0.0
    %100 = vmatpush1.msra.mxu0 0.0
    %101 = vmatprep.subr.mxu0 0.0
    %102 = vmatpush1.msra.mxu0 0.0
    %103 = vmatprep.subr.mxu0 0.0
    %104 = vmatpush1.msra.mxu0 0.0
    %105 = vmatprep.subr.mxu0 0.0
    %106 = vmatpush1.msra.mxu0 0.0
    %107 = vmatprep.subr.mxu0 0.0
    %108 = vmatpush1.msra.mxu0 0.0
    %109 = vmatprep.subr.mxu0 0.0
    %110 = vmatpush1.msra.mxu0 0.0
    %111 = vmatprep.subr.mxu0 0.0
    %112 = vmatpush1.msra.mxu0 0.0
    %113 = vmatprep.subr.mxu0 0.0
    %114 = vmatpush1.msra.mxu0 0.0
    %115 = vmatprep.mubr.f32.mxu0 0.0
    %116 = vmatmul.mubr.f32.gmra.mrb[0].mxu0 %v33
    %v117 = vpop.f32.mrb[0].mxu0
    %v118 = vadd.f32 0.0, %v117
    %v119 = vpop.f32.mrb[0].mxu0
    %120 = vmatprep.mubr.f32.mxu0 0.0
    %121 = vmatmul.mubr.f32.gmra.mrb[0].mxu0 %v34
    %v122 = vpop.f32.mrb[0].mxu0
    %v123 = vadd.f32 0.0, %v122
    %v124 = vpop.f32.mrb[0].mxu0
    %125 = vdwg.mxu0
    %v126 = vadd.f32 %v31, %v118
    %v127 = vadd.f32 %v32, %v123
    %128 = vst [vmem:[%s2] sm:$0xff] %v126
    %129 = vst [vmem:[%s2 + $0x8] sm:$0xff] %v127
    // Predicated region
    $region18: #{_linear_quant_lora_forward.2} parent=1 // pred_check
      _
    $region19: #{_linear_quant_lora_forward.2} parent=1 // pred_check_branch
      %131 = sbr.rel (0) target = $region21
    $region20: #{_linear_quant_lora_forward.2} parent=1 // pred_region
      _
    $region21: #{_linear_quant_lora_forward.2} parent=1 // pred_fallthru
      _
    // Predicated region
    $region22: #{_linear_quant_lora_forward.2} parent=1 // pred_check
      _
    $region23: #{_linear_quant_lora_forward.2} parent=1 // pred_check_branch
      %133 = sbr.rel (0) target = $region25
    $region24: #{_linear_quant_lora_forward.2} parent=1 // pred_region
      _
    $region25: #{_linear_quant_lora_forward.2} parent=1 // pred_fallthru
      _
    %134 = vsyncpa [#allocation3], 1

</llo_original>
